<compile_context>
chip_gen: v5e
topology: v5e:2x2
jax: 0.10.0
libtpu: 0.0.40
codegen_flags: <defaults>
</compile_context>

<pallas_src>
import jax
import jax.numpy as jnp
import numpy as np
from jax.experimental import pallas as pl
from jax.experimental.pallas import tpu as pltpu


def _round_up(n, m):
    return ((n + m - 1) // m) * m


def _lr_kernel(x_ref, off_ref, w_ref, b_ref, o_ref):
    # x_ref:   (F, TB) int32 per-field LOCAL indices, batch on lane axis
    # off_ref: (F,)    int32 field offsets, SMEM
    # w_ref:   (V, 1)  f32 embedding weight column, resident across grid steps
    # b_ref:   (1,)    f32 bias, SMEM
    # o_ref:   (1, TB) f32 sigmoid(logits), lane-dense output row
    F, TB = x_ref.shape
    V = w_ref.shape[0]

    idx = x_ref[...]                                              # (F, TB)
    vocab = jax.lax.broadcasted_iota(jnp.int32, (V, TB), 0)       # hoisted
    w_b = jnp.broadcast_to(w_ref[...], (V, TB))                   # hoisted lane-broadcast

    # Per-field accumulate: only one (V, TB) live at a time (no (B,F,V) tensor).
    acc = jnp.zeros((V, TB), jnp.float32)
    for f in range(F):                                            # F static & small
        row = idx[f:f + 1, :] + off_ref[f]                        # (1, TB) global idx
        mask = vocab == row                                       # (V, TB) bool
        acc = acc + jnp.where(mask, w_b, 0.0)                     # select, no cast pass

    logits = jnp.sum(acc, axis=0, keepdims=True) + b_ref[0]       # (1, TB)
    o_ref[...] = jax.nn.sigmoid(logits)


def lr_model_forward(x, weight, bias, offsets, *, max_tile=512):
    """x: (B, F) int per-field indices; weight: (V,) f32; bias: (1,); offsets: (F,)."""
    B, F = x.shape
    V = int(weight.shape[0])

    # Batch on the lane axis; pad batch to a multiple of the tile (lane-aligned).
    xt = x.astype(jnp.int32).T                                    # (F, B)
    TB = min(max_tile, _round_up(B, 128))
    B_pad = _round_up(B, TB)
    if B_pad != B:
        xt = jnp.pad(xt, ((0, 0), (0, B_pad - B)))                # pad rows -> local idx 0

    w_col = weight.reshape(V, 1).astype(jnp.float32)              # (V, 1) column
    off = offsets.reshape(F).astype(jnp.int32)                    # SMEM
    b = bias.reshape(1).astype(jnp.float32)                       # SMEM

    grid = (B_pad // TB,)
    cost = pl.CostEstimate(
        flops=int(B_pad * (3 * F * V + V + 4)),
        transcendentals=int(B_pad),
        bytes_accessed=int(xt.size * 4 + V * 4 + B_pad * 4 + F * 4 + 4),
    )

    out = pl.pallas_call(
        _lr_kernel,
        out_shape=jax.ShapeDtypeStruct((1, B_pad), jnp.float32),
        grid=grid,
        in_specs=[
            pl.BlockSpec((F, TB), lambda i: (0, i)),              # indices, lane-dense
            pl.BlockSpec(memory_space=pltpu.SMEM),                # offsets
            pl.BlockSpec((V, 1), lambda i: (0, 0)),               # weight, resident
            pl.BlockSpec(memory_space=pltpu.SMEM),                # bias
        ],
        out_specs=pl.BlockSpec((1, TB), lambda i: (0, i)),        # lane-dense output
        compiler_params=pltpu.CompilerParams(
            dimension_semantics=("parallel",)),                   # v7x: 2 TCs
        cost_estimate=cost,
    )(xt, off, w_col, b)

    return out[0, :B]                                             # squeeze / drop padding


def _reference(x, weight, bias, offsets):
    x_glob = x.astype(jnp.int32) + offsets[None, :].astype(jnp.int32)
    emb = weight[x_glob]                       # (B, F)
    logits = jnp.sum(emb, axis=1) + bias[0]    # (B,)
    return jax.nn.sigmoid(logits)


if __name__ == "__main__":
    # Synthetic "field_dims" (categorical feature cardinalities).
    field_dims = (8, 16, 4, 4)                 # V = sum = 32, num_fields = 4
    V = int(np.sum(field_dims))
    num_fields = len(field_dims)

    offsets = jnp.asarray(
        np.concatenate(([0], np.cumsum(field_dims)[:-1])).astype(np.int32))

    key = jax.random.PRNGKey(0)
    kw, kx1, kx2 = jax.random.split(key, 3)
    # nn.Embedding default init: N(0, 1); bias init: zeros.
    weight = jax.random.normal(kw, (V,), dtype=jnp.float32)
    bias = jnp.zeros((1,), dtype=jnp.float32)

    def make_x(k, batch):
        cols = []
        ks = jax.random.split(k, num_fields)
        for f in range(num_fields):
            cols.append(jax.random.randint(ks[f], (batch,), 0, field_dims[f],
                                           dtype=jnp.int32))
        return jnp.stack(cols, axis=1)         # (batch, num_fields) int32

    # Small case (matches module's toy shape): batch=2 -> one 128-lane tile.
    x_small = make_x(kx1, 2)
    out_small = lr_model_forward(x_small, weight, bias, offsets)
    jax.block_until_ready(out_small)
    np.testing.assert_allclose(np.asarray(out_small),
                               np.asarray(_reference(x_small, weight, bias, offsets)),
                               rtol=1e-5, atol=1e-5)
    assert out_small.shape == (2,)

    # Larger case exercising batch tiling + padding (grid of 2 parallel steps).
    x_big = make_x(kx2, 640)
    out_big = lr_model_forward(x_big, weight, bias, offsets)
    jax.block_until_ready(out_big)
    np.testing.assert_allclose(np.asarray(out_big),
                               np.asarray(_reference(x_big, weight, bias, offsets)),
                               rtol=1e-5, atol=1e-5)
    assert out_big.shape == (640,)

    print("KERNEL_OK")
</pallas_src>

<mosaic_0001>
module attributes {stable_mosaic.version = 11 : i64} {
  func.func @_lr_kernel(%arg0: i32, %arg1: memref<4x128xi32, #tpu.memory_space<vmem>>, %arg2: memref<4xi32, #tpu.memory_space<smem>>, %arg3: memref<32x1xf32, #tpu.memory_space<vmem>>, %arg4: memref<1xf32, #tpu.memory_space<smem>>, %arg5: memref<1x128xf32, #tpu.memory_space<vmem>>) attributes {dimension_semantics = [#tpu.dimension_semantics<parallel>], iteration_bounds = array<i64: 1>, scalar_prefetch = 0 : i64, scratch_operands = 0 : i64, tpu.core_type = #tpu.core_type<tc>, window_params = [{transform_indices = @transform_0, window_bounds = array<i64: 4, 128>}, {transform_indices = @transform_1, window_bounds = array<i64: 4>}, {pipeline_mode = #tpu.pipeline_mode<synchronous>, transform_indices = @transform_2, window_bounds = array<i64: 32, 1>}, {transform_indices = @transform_3, window_bounds = array<i64: 1>}, {transform_indices = @transform_4, window_bounds = array<i64: 1, 128>}]} {
    %c0 = arith.constant 0 : index
    %c0_0 = arith.constant 0 : index
    %0 = vector.load %arg1[%c0, %c0_0] : memref<4x128xi32, #tpu.memory_space<vmem>>, vector<4x128xi32>
    %1 = tpu.iota {dimensions = array<i32: 0>} : vector<32x128xi32>
    %c0_1 = arith.constant 0 : index
    %c0_2 = arith.constant 0 : index
    %2 = vector.load %arg3[%c0_1, %c0_2] : memref<32x1xf32, #tpu.memory_space<vmem>>, vector<32x1xf32>
    %3 = vector.shape_cast %2 : vector<32x1xf32> to vector<32x1xf32>
    %4 = vector.broadcast %3 : vector<32x1xf32> to vector<32x128xf32>
    %cst = arith.constant 0.000000e+00 : f32
    %5 = vector.broadcast %cst : f32 to vector<32x128xf32>
    %6 = vector.extract_strided_slice %0 {offsets = [0, 0], sizes = [1, 128], strides = [1, 1]} : vector<4x128xi32> to vector<1x128xi32>
    %c0_3 = arith.constant 0 : index
    %7 = memref.load %arg2[%c0_3] : memref<4xi32, #tpu.memory_space<smem>>
    %8 = vector.broadcast %7 : i32 to vector<1x128xi32>
    %9 = arith.addi %6, %8 : vector<1x128xi32>
    %10 = vector.broadcast %9 : vector<1x128xi32> to vector<32x128xi32>
    %11 = arith.cmpi eq, %1, %10 : vector<32x128xi32>
    %cst_4 = arith.constant 0.000000e+00 : f32
    %12 = vector.broadcast %cst_4 : f32 to vector<32x128xf32>
    %13 = arith.select %11, %4, %12 : vector<32x128xi1>, vector<32x128xf32>
    %14 = arith.addf %5, %13 : vector<32x128xf32>
    %15 = vector.extract_strided_slice %0 {offsets = [1, 0], sizes = [1, 128], strides = [1, 1]} : vector<4x128xi32> to vector<1x128xi32>
    %c1 = arith.constant 1 : index
    %16 = memref.load %arg2[%c1] : memref<4xi32, #tpu.memory_space<smem>>
    %17 = vector.broadcast %16 : i32 to vector<1x128xi32>
    %18 = arith.addi %15, %17 : vector<1x128xi32>
    %19 = vector.broadcast %18 : vector<1x128xi32> to vector<32x128xi32>
    %20 = arith.cmpi eq, %1, %19 : vector<32x128xi32>
    %cst_5 = arith.constant 0.000000e+00 : f32
    %21 = vector.broadcast %cst_5 : f32 to vector<32x128xf32>
    %22 = arith.select %20, %4, %21 : vector<32x128xi1>, vector<32x128xf32>
    %23 = arith.addf %14, %22 : vector<32x128xf32>
    %24 = vector.extract_strided_slice %0 {offsets = [2, 0], sizes = [1, 128], strides = [1, 1]} : vector<4x128xi32> to vector<1x128xi32>
    %c2 = arith.constant 2 : index
    %25 = memref.load %arg2[%c2] : memref<4xi32, #tpu.memory_space<smem>>
    %26 = vector.broadcast %25 : i32 to vector<1x128xi32>
    %27 = arith.addi %24, %26 : vector<1x128xi32>
    %28 = vector.broadcast %27 : vector<1x128xi32> to vector<32x128xi32>
    %29 = arith.cmpi eq, %1, %28 : vector<32x128xi32>
    %cst_6 = arith.constant 0.000000e+00 : f32
    %30 = vector.broadcast %cst_6 : f32 to vector<32x128xf32>
    %31 = arith.select %29, %4, %30 : vector<32x128xi1>, vector<32x128xf32>
    %32 = arith.addf %23, %31 : vector<32x128xf32>
    %33 = vector.extract_strided_slice %0 {offsets = [3, 0], sizes = [1, 128], strides = [1, 1]} : vector<4x128xi32> to vector<1x128xi32>
    %c3 = arith.constant 3 : index
    %34 = memref.load %arg2[%c3] : memref<4xi32, #tpu.memory_space<smem>>
    %35 = vector.broadcast %34 : i32 to vector<1x128xi32>
    %36 = arith.addi %33, %35 : vector<1x128xi32>
    %37 = vector.broadcast %36 : vector<1x128xi32> to vector<32x128xi32>
    %38 = arith.cmpi eq, %1, %37 : vector<32x128xi32>
    %cst_7 = arith.constant 0.000000e+00 : f32
    %39 = vector.broadcast %cst_7 : f32 to vector<32x128xf32>
    %40 = arith.select %38, %4, %39 : vector<32x128xi1>, vector<32x128xf32>
    %41 = arith.addf %32, %40 : vector<32x128xf32>
    %cst_8 = arith.constant dense<0.000000e+00> : vector<128xf32>
    %42 = vector.multi_reduction <add>, %41, %cst_8 [0] : vector<32x128xf32> to vector<128xf32>
    %43 = vector.shape_cast %42 : vector<128xf32> to vector<1x128xf32>
    %c0_9 = arith.constant 0 : index
    %44 = memref.load %arg4[%c0_9] : memref<1xf32, #tpu.memory_space<smem>>
    %45 = vector.broadcast %44 : f32 to vector<1x128xf32>
    %46 = arith.addf %43, %45 : vector<1x128xf32>
    %47 = arith.negf %46 : vector<1x128xf32>
    %48 = math.exp %47 : vector<1x128xf32>
    %cst_10 = arith.constant 1.000000e+00 : f32
    %49 = vector.broadcast %cst_10 : f32 to vector<1x128xf32>
    %50 = arith.addf %49, %48 : vector<1x128xf32>
    %51 = arith.divf %49, %50 : vector<1x128xf32>
    %c0_11 = arith.constant 0 : index
    %c0_12 = arith.constant 0 : index
    %52 = vector.load %arg5[%c0_11, %c0_12] : memref<1x128xf32, #tpu.memory_space<vmem>>, vector<1x128xf32>
    tpu.vector_store %arg5[%c0_11, %c0_12], %51 {strides = array<i32>} : memref<1x128xf32, #tpu.memory_space<vmem>>, vector<1x128xf32>,
    return
  }
  func.func @transform_0(%arg0: i32) -> (i32, i32) {
    %c0_i32 = arith.constant 0 : i32
    %c0_i32_0 = arith.constant 0 : i32
    return %c0_i32, %arg0 : i32, i32
  }
  func.func @transform_1(%arg0: i32) -> i32 {
    %c0_i32 = arith.constant 0 : i32
    %c0_i32_0 = arith.constant 0 : i32
    return %c0_i32 : i32
  }
  func.func @transform_2(%arg0: i32) -> (i32, i32) {
    %c0_i32 = arith.constant 0 : i32
    %c0_i32_0 = arith.constant 0 : i32
    %c0_i32_1 = arith.constant 0 : i32
    return %c0_i32, %c0_i32_0 : i32, i32
  }
  func.func @transform_3(%arg0: i32) -> i32 {
    %c0_i32 = arith.constant 0 : i32
    %c0_i32_0 = arith.constant 0 : i32
    return %c0_i32 : i32
  }
  func.func @transform_4(%arg0: i32) -> (i32, i32) {
    %c0_i32 = arith.constant 0 : i32
    %c0_i32_0 = arith.constant 0 : i32
    return %c0_i32, %arg0 : i32, i32
  }
}

</mosaic_0001>

<llo_original>
// kernel: tpu_custom_call.1
$region0: #{tpu_custom_call.1}
  #allocation0 [shape = 'u32[]', space=smem, size = 0x4, offset = 0x4, fixed_abs, tag = 'smem constant byte address 0x4 - core index']
  #allocation1 [shape = 'u32[72,128]{1,0:T(1,128)}', space=vmem, size = 0x9000, scoped, tag = 'internal scratch']
  #allocation2 [shape = 'f32[1]{0:T(128)S(6)}', space=smem, size = 0x200, scoped, tag = 'scoped memory for tpu_custom_call.1']
  %s0 = inlined_call_operand.vmem [shape: s32[4,128], index: 0, kind: input, shape index: {}]
  %s1 = inlined_call_operand.vmem [shape: s32[4], index: 1, kind: input, shape index: {}]
  %s2 = inlined_call_operand.vmem [shape: f32[32,1], index: 2, kind: input, shape index: {}]
  %s3 = inlined_call_operand.<no memory space> [shape: f32[1], index: 3, kind: input, shape index: {}]
  %s4 = inlined_call_operand.hbm [shape: f32[1,128], index: 4, kind: output, shape index: {}]
  %s5 = sld [smem:[#allocation0]]
  $region30: #{tpu_custom_call.1} parent=0
    _
  %s7 = ssub.s32 1, %s5
  %s8 = scalar_select 0, %s7, %s5
  %9 = sst [smem:[#allocation2]] %s3
  $region1: #{tpu_custom_call.1} parent=0
    #allocation3 [shape = 'u8[512]{0}', space=smem, size = 0x200, scoped, tag = 'input window, operand 1, single buffered']
    #allocation4 [shape = 's32[1]{0}', space=sflag, size = 0x4, scoped, tag = 'scoped memory for tpu_custom_call.1']
    #allocation5 [shape = 's32[1]{0}', space=sflag, size = 0x4, scoped, tag = 'scoped memory for tpu_custom_call.1']
    #allocation6 [shape = 'u8[512]{0}', space=vmem, size = 0x400, scoped, tag = 'output window, operand 0, single buffered']
    %10 = vsyncpa [#allocation5], 0
    %11 = vsyncpa [#allocation4], 0
    // Predicated region
    $region2: #{tpu_custom_call.1} parent=1 // pred_check
      _
    $region3: #{tpu_custom_call.1} parent=1 // pred_check_branch
      %13 = sbr.rel (0) target = $region5
    $region4: #{tpu_custom_call.1} parent=1 // pred_region
      _
    $region5: #{tpu_custom_call.1} parent=1 // pred_fallthru
      _
    // Predicated region
    $region6: #{tpu_custom_call.1} parent=1 // pred_check
      _
    $region7: #{tpu_custom_call.1} parent=1 // pred_check_branch
      %15 = sbr.rel (0) target = $region9
    $region8: #{tpu_custom_call.1} parent=1 // pred_region
      %17 = vsyncadd [#allocation5], 0
      %s19 = sshll.u32 %s1, 4
      %s20 = int_to_ptr.vmem [resolvable:$true] %s19
      %22 = dma.vmem_to_smem %s20, 16, [#allocation3], [#allocation5]
    $region9: #{tpu_custom_call.1} parent=1 // pred_fallthru
      _
    // Predicated region
    $region10: #{tpu_custom_call.1} parent=1 // pred_check
      _
    $region11: #{tpu_custom_call.1} parent=1 // pred_check_branch
      %24 = sbr.rel (0) target = $region13
    $region12: #{tpu_custom_call.1} parent=1 // pred_region
      _
    $region13: #{tpu_custom_call.1} parent=1 // pred_fallthru
      _
    // Predicated region
    $region14: #{tpu_custom_call.1} parent=1 // pred_check
      _
    $region15: #{tpu_custom_call.1} parent=1 // pred_check_branch
      %26 = sbr.rel (0) target = $region17
    $region16: #{tpu_custom_call.1} parent=1 // pred_region
      _
    $region17: #{tpu_custom_call.1} parent=1 // pred_fallthru
      _
    // Predicated region
    $region18: #{tpu_custom_call.1} parent=1 // pred_check
      _
    $region19: #{tpu_custom_call.1} parent=1 // pred_check_branch
      %28 = sbr.rel (0) target = $region21
    $region20: #{tpu_custom_call.1} parent=1 // pred_region
      %30 = dma.done [#allocation5], 16
    $region21: #{tpu_custom_call.1} parent=1 // pred_fallthru
      _
    %31 = sfence
    %v32 = vld [vmem:[%s0] sm:$0xf]
    %v33 = vlaneseq
    %v34 = vshrl.u32 %v33, 7
    %v35 = vadd.s32 %v34, 8
    %v36 = vadd.s32 %v34, 16
    %v37 = vadd.s32 %v34, 24
    %v38 = vld [vmem:[%s2] sm:$0xff]
    %v39 = vld [vmem:[%s2 + $0x8] sm:$0xff]
    %v40 = vld [vmem:[%s2 + $0x10] sm:$0xff]
    %v41 = vld [vmem:[%s2 + $0x18] sm:$0xff]
    %43 = vset.pattern.permute.xlu0 0
    %44 = vperm.xlu0 %43, %v38
    %v45 = vpop.permute.xlu0 %44
    %48 = vset.pattern.permute.xlu0 0
    %49 = vperm.xlu0 %48, %v39
    %v50 = vpop.permute.xlu0 %49
    %53 = vset.pattern.permute.xlu0 0
    %54 = vperm.xlu0 %53, %v40
    %v55 = vpop.permute.xlu0 %54
    %58 = vset.pattern.permute.xlu0 0
    %59 = vperm.xlu0 %58, %v41
    %v60 = vpop.permute.xlu0 %59
    %s62 = sld [smem:[#allocation3]]
    %v63 = vstv %s62
    %v64 = vadd.s32 %v32, %v63
    %v65 = vperm.slane %v64, 0
    %vm66 = vcmp.eq.s32.totalorder %v34, %v65
    %vm67 = vcmp.eq.s32.totalorder %v35, %v65
    %vm68 = vcmp.eq.s32.totalorder %v36, %v65
    %vm69 = vcmp.eq.s32.totalorder %v37, %v65
    %v70 = vsel %vm66, %v45, 0.0
    %v71 = vsel %vm67, %v50, 0.0
    %v72 = vsel %vm68, %v55, 0.0
    %v73 = vsel %vm69, %v60, 0.0
    %v74 = vadd.f32 %v70, 0.0
    %v75 = vadd.f32 %v71, 0.0
    %v76 = vadd.f32 %v72, 0.0
    %v77 = vadd.f32 %v73, 0.0
    %s78 = sld [smem:[#allocation3 + $0x1]]
    %v79 = vstv %s78
    %v80 = vadd.s32 %v32, %v79
    %v81 = vperm.slane %v80, 1
    %vm82 = vcmp.eq.s32.totalorder %v34, %v81
    %vm83 = vcmp.eq.s32.totalorder %v35, %v81
    %vm84 = vcmp.eq.s32.totalorder %v36, %v81
    %vm85 = vcmp.eq.s32.totalorder %v37, %v81
    %v86 = vsel %vm82, %v45, 0.0
    %v87 = vsel %vm83, %v50, 0.0
    %v88 = vsel %vm84, %v55, 0.0
    %v89 = vsel %vm85, %v60, 0.0
    %v90 = vadd.f32 %v74, %v86
    %v91 = vadd.f32 %v75, %v87
    %v92 = vadd.f32 %v76, %v88
    %v93 = vadd.f32 %v77, %v89
    %s94 = sld [smem:[#allocation3 + $0x2]]
    %v95 = vstv %s94
    %v96 = vadd.s32 %v32, %v95
    %v97 = vperm.slane %v96, 2
    %vm98 = vcmp.eq.s32.totalorder %v34, %v97
    %vm99 = vcmp.eq.s32.totalorder %v35, %v97
    %vm100 = vcmp.eq.s32.totalorder %v36, %v97
    %vm101 = vcmp.eq.s32.totalorder %v37, %v97
    %v102 = vsel %vm98, %v45, 0.0
    %v103 = vsel %vm99, %v50, 0.0
    %v104 = vsel %vm100, %v55, 0.0
    %v105 = vsel %vm101, %v60, 0.0
    %v106 = vadd.f32 %v90, %v102
    %v107 = vadd.f32 %v91, %v103
    %v108 = vadd.f32 %v92, %v104
    %v109 = vadd.f32 %v93, %v105
    %s110 = sld [smem:[#allocation3 + $0x3]]
    %v111 = vstv %s110
    %v112 = vadd.s32 %v32, %v111
    %v113 = vperm.slane %v112, 3
    %vm114 = vcmp.eq.s32.totalorder %v34, %v113
    %vm115 = vcmp.eq.s32.totalorder %v35, %v113
    %vm116 = vcmp.eq.s32.totalorder %v36, %v113
    %vm117 = vcmp.eq.s32.totalorder %v37, %v113
    %v118 = vsel %vm114, %v45, 0.0
    %v119 = vsel %vm115, %v50, 0.0
    %v120 = vsel %vm116, %v55, 0.0
    %v121 = vsel %vm117, %v60, 0.0
    %v122 = vadd.f32 %v106, %v118
    %v123 = vadd.f32 %v107, %v119
    %v124 = vadd.f32 %v108, %v120
    %v125 = vadd.f32 %v109, %v121
    %v126 = vadd.f32 %v122, %v123
    %v127 = vadd.f32 %v126, %v124
    %v128 = vadd.f32 %v127, %v125
    %v129 = vrot.slane %v128, 4
    %v130 = vadd.f32 %v128, %v129
    %v131 = vrot.slane %v130, 2
    %v132 = vadd.f32 %v130, %v131
    %v133 = vrot.slane %v132, 1
    %v134 = vadd.f32 %v132, %v133
    %s135 = sld [smem:[#allocation2]]
    %v136 = vstv %s135
    %v137 = vadd.f32 %v134, %v136
    %v138 = vxor.u32 %v137, 2147483648
    %v139 = vmul.f32 %v138, 1.442695
    %v140 = vpow.pop %v139
    %v141 = vadd.f32 %v140, 1.0
    %v142 = vrcp.pop %v141
    %v143 = vmul.f32 %v141, %v142
    %v144 = vsub.f32 1.0, %v143
    %v145 = vmul.f32 %v142, %v144
    %v146 = vadd.f32 %v142, %v145
    %vm147 = vweird.f32 %v141
    %vm148 = vweird.f32 %v142
    %vm149 = vmor %vm147, %vm148
    %v150 = vsel %vm149, %v142, %v146
    %v151 = vand.u32 2147483647, %v141
    %vm152 = vcmp.eq.f32.partialorder %v151, 8.507059e+37
    %v153 = vand.u32 %v141, 2147483648
    %v154 = vor.u32 1.1754944e-38, %v153
    %v155 = vsel %vm152, %v154, %v150
    %v156 = vmul.f32 1.0, %v155
    %157 = vst [vmem:[#allocation6] sm:$0x1] %v156
    // Predicated region
    $region22: #{tpu_custom_call.1} parent=1 // pred_check
      _
    $region23: #{tpu_custom_call.1} parent=1 // pred_check_branch
      %159 = sbr.rel (0) target = $region25
    $region24: #{tpu_custom_call.1} parent=1 // pred_region
      %161 = vsyncadd [#allocation4], 0
      %s163 = sshll.u32 [#allocation6], 4
      %s164 = int_to_ptr.vmem [resolvable:$true] %s163
      %s165 = sshll.u32 %s4, 4
      %s166 = int_to_ptr.hbm [resolvable:$true] %s165
      %168 = dma.vmem_to_hbm [thread:$0]  %s164, 16, %s166, [#allocation4]
    $region25: #{tpu_custom_call.1} parent=1 // pred_fallthru
      _
    // Predicated region
    $region26: #{tpu_custom_call.1} parent=1 // pred_check
      _
    $region27: #{tpu_custom_call.1} parent=1 // pred_check_branch
      %170 = sbr.rel (0) target = $region29
    $region28: #{tpu_custom_call.1} parent=1 // pred_region
      %172 = dma.done [#allocation4], 16
    $region29: #{tpu_custom_call.1} parent=1 // pred_fallthru
      _
    %173 = vsyncpa [#allocation4], 1
    %174 = vsyncpa [#allocation5], 1

</llo_original>
